<compile_context>
chip_gen: v5e
topology: v5e:2x2
jax: 0.10.0
libtpu: 0.0.40
codegen_flags: <defaults>
</compile_context>

<pallas_src>
import math

import jax
import jax.numpy as jnp
from jax.experimental import pallas as pl
from jax.experimental.pallas import tpu as pltpu


def _copy_kernel(x_ref, o_ref):
    # Pure lane-dense tile copy; no reshape, no relayout.
    o_ref[...] = x_ref[...]


def _largest_divisor_tile(dim: int, unit: int, max_elems: int) -> int:
    """Largest multiple of `unit` that divides `dim` and is <= max_elems.

    Falls back to the full extent if `dim` is not a multiple of `unit`
    (full-extent blocks are always legal, just masked)."""
    if dim % unit != 0:
        return dim
    best = unit
    t = unit
    limit = min(dim, max_elems)
    while t <= limit:
        if dim % t == 0:
            best = t
        t += unit
    return best


def fc_view(x: jax.Array) -> jax.Array:
    """Pallas implementation of FCView.forward: (B, ...) -> (B, prod(...))."""
    nB = x.shape[0]
    flat = int(math.prod(x.shape[1:])) if x.ndim > 1 else 1

    # Row-major flatten == torch .view(nB, -1).  This is a free (metadata-only)
    # reshape in XLA; the kernel only sees lane-dense 2-D blocks.
    x2 = x.reshape(nB, flat)

    itemsize = jnp.dtype(x.dtype).itemsize

    # --- column (lane) tile: large multiple of 128 for unmasked vld/vst -----
    LANE = 128
    MAX_COL_TILE = 4096  # elements; keeps per-tile bytes modest
    tf = _largest_divisor_tile(flat, LANE, MAX_COL_TILE)

    # --- row (sublane) tile: multiple of packed sublane count per dtype -----
    sub = max(1, 32 // itemsize)  # 8 for f32, 16 for bf16, 32 for int8
    # Cap tile bytes so double-buffered input + output (4 * tile_bytes) fits
    # comfortably under every chip's default scoped VMEM (v5e: 16 MiB).
    TILE_BYTE_BUDGET = 2 * 1024 * 1024
    max_rows = max(sub, (TILE_BYTE_BUDGET // max(1, tf * itemsize)) // sub * sub)
    tb = _largest_divisor_tile(nB, sub, max_rows)

    grid = (nB // tb, flat // tf)

    return pl.pallas_call(
        _copy_kernel,
        out_shape=jax.ShapeDtypeStruct((nB, flat), x.dtype),
        grid_spec=pl.GridSpec(
            grid=grid,
            in_specs=[pl.BlockSpec((tb, tf), lambda i, j: (i, j))],
            out_specs=pl.BlockSpec((tb, tf), lambda i, j: (i, j)),
        ),
        compiler_params=pltpu.CompilerParams(
            # Every tile is independent -> both axes parallel (uses both
            # TensorCores on v7x; harmless elsewhere).
            dimension_semantics=("parallel", "parallel"),
        ),
        cost_estimate=pl.CostEstimate(
            flops=0,
            transcendentals=0,
            bytes_accessed=2 * nB * flat * itemsize,
        ),
    )(x2)


if __name__ == "__main__":
    key = jax.random.PRNGKey(0)
    # Shapes consistent with a conv feature map feeding an FC layer.
    B, C, H, W = 2, 4, 16, 16
    x = jax.random.normal(key, (B, C, H, W), dtype=jnp.float32)

    y = fc_view(x)
    y = jax.block_until_ready(y)

    # Reference: plain reshape (same semantics as torch .view(nB, -1)).
    y_ref = x.reshape(B, -1)
    assert y.shape == (B, C * H * W), y.shape
    assert jnp.array_equal(y, y_ref), "FCView Pallas output mismatch"

    print("KERNEL_OK")
</pallas_src>

<mosaic_0001>
module attributes {stable_mosaic.version = 11 : i64} {
  func.func @_copy_kernel(%arg0: i32, %arg1: i32, %arg2: memref<2x1024xf32, #tpu.memory_space<vmem>>, %arg3: memref<2x1024xf32, #tpu.memory_space<vmem>>) attributes {dimension_semantics = [#tpu.dimension_semantics<parallel>, #tpu.dimension_semantics<parallel>], iteration_bounds = array<i64: 1, 1>, scalar_prefetch = 0 : i64, scratch_operands = 0 : i64, tpu.core_type = #tpu.core_type<tc>, window_params = [{transform_indices = @transform_0, window_bounds = array<i64: 2, 1024>}, {transform_indices = @transform_1, window_bounds = array<i64: 2, 1024>}]} {
    %c0 = arith.constant 0 : index
    %c0_0 = arith.constant 0 : index
    %0 = vector.load %arg2[%c0, %c0_0] : memref<2x1024xf32, #tpu.memory_space<vmem>>, vector<2x1024xf32>
    %c0_1 = arith.constant 0 : index
    %c0_2 = arith.constant 0 : index
    %1 = vector.load %arg3[%c0_1, %c0_2] : memref<2x1024xf32, #tpu.memory_space<vmem>>, vector<2x1024xf32>
    tpu.vector_store %arg3[%c0_1, %c0_2], %0 {strides = array<i32>} : memref<2x1024xf32, #tpu.memory_space<vmem>>, vector<2x1024xf32>,
    return
  }
  func.func @transform_0(%arg0: i32, %arg1: i32) -> (i32, i32) {
    %c0_i32 = arith.constant 0 : i32
    return %arg0, %arg1 : i32, i32
  }
  func.func @transform_1(%arg0: i32, %arg1: i32) -> (i32, i32) {
    %c0_i32 = arith.constant 0 : i32
    return %arg0, %arg1 : i32, i32
  }
}

</mosaic_0001>

<llo_original>
// kernel: tpu_custom_call.1
$region0: #{tpu_custom_call.1}
  #allocation0 [shape = 'u32[]', space=smem, size = 0x4, offset = 0x4, fixed_abs, tag = 'smem constant byte address 0x4 - core index']
  #allocation1 [shape = 'u32[72,128]{1,0:T(1,128)}', space=vmem, size = 0x9000, scoped, tag = 'internal scratch']
  %s0 = inlined_call_operand.hbm [shape: f32[2,1024], index: 0, kind: input, shape index: {}]
  %s1 = inlined_call_operand.hbm [shape: f32[2,1024], index: 1, kind: output, shape index: {}]
  %s2 = sld [smem:[#allocation0]]
  $region18: #{tpu_custom_call.1} parent=0
    _
  %s4 = ssub.s32 1, %s2
  %s5 = scalar_select 0, %s4, %s2
  $region1: #{tpu_custom_call.1} parent=0
    #allocation2 [shape = 'u8[8192]{0}', space=vmem, size = 0x2000, scoped, tag = 'input window, operand 0, single buffered']
    #allocation3 [shape = 's32[1]{0}', space=sflag, size = 0x4, scoped, tag = 'scoped memory for tpu_custom_call.1']
    #allocation4 [shape = 's32[1]{0}', space=sflag, size = 0x4, scoped, tag = 'scoped memory for tpu_custom_call.1']
    #allocation5 [shape = 'u8[8192]{0}', space=vmem, size = 0x2000, scoped, tag = 'output window, operand 0, single buffered']
    %6 = vsyncpa [#allocation3], 0
    %7 = vsyncpa [#allocation4], 0
    // Predicated region
    $region2: #{tpu_custom_call.1} parent=1 // pred_check
      _
    $region3: #{tpu_custom_call.1} parent=1 // pred_check_branch
      %9 = sbr.rel (0) target = $region5
    $region4: #{tpu_custom_call.1} parent=1 // pred_region
      %11 = vsyncadd [#allocation3], 0
      %s13 = sshll.u32 %s0, 4
      %s14 = int_to_ptr.hbm [resolvable:$true] %s13
      %s15 = sshll.u32 [#allocation2], 4
      %s16 = int_to_ptr.vmem [resolvable:$true] %s15
      %18 = dma.hbm_to_vmem [thread:$0]  %s14, 256, %s16, [#allocation3]
    $region5: #{tpu_custom_call.1} parent=1 // pred_fallthru
      _
    // Predicated region
    $region6: #{tpu_custom_call.1} parent=1 // pred_check
      _
    $region7: #{tpu_custom_call.1} parent=1 // pred_check_branch
      %20 = sbr.rel (0) target = $region9
    $region8: #{tpu_custom_call.1} parent=1 // pred_region
      %22 = dma.done [#allocation3], 256
    $region9: #{tpu_custom_call.1} parent=1 // pred_fallthru
      _
    %v23 = vld [vmem:[#allocation2] sm:$0xff]
    %v24 = vld [vmem:[#allocation2 + $0x8] sm:$0xff]
    %25 = vst [vmem:[#allocation5] sm:$0xff] %v23
    %26 = vst [vmem:[#allocation5 + $0x8] sm:$0xff] %v24
    // Predicated region
    $region10: #{tpu_custom_call.1} parent=1 // pred_check
      _
    $region11: #{tpu_custom_call.1} parent=1 // pred_check_branch
      %28 = sbr.rel (0) target = $region13
    $region12: #{tpu_custom_call.1} parent=1 // pred_region
      %30 = vsyncadd [#allocation4], 0
      %s32 = sshll.u32 [#allocation5], 4
      %s33 = int_to_ptr.vmem [resolvable:$true] %s32
      %s34 = sshll.u32 %s1, 4
      %s35 = int_to_ptr.hbm [resolvable:$true] %s34
      %37 = dma.vmem_to_hbm [thread:$0]  %s33, 256, %s35, [#allocation4]
    $region13: #{tpu_custom_call.1} parent=1 // pred_fallthru
      _
    // Predicated region
    $region14: #{tpu_custom_call.1} parent=1 // pred_check
      _
    $region15: #{tpu_custom_call.1} parent=1 // pred_check_branch
      %39 = sbr.rel (0) target = $region17
    $region16: #{tpu_custom_call.1} parent=1 // pred_region
      %41 = dma.done [#allocation4], 256
    $region17: #{tpu_custom_call.1} parent=1 // pred_fallthru
      _
    %42 = vsyncpa [#allocation3], 1
    %43 = vsyncpa [#allocation4], 1

</llo_original>
